<compile_context>
chip_gen: v7x
topology: tpu7x:2x2x1
jax: 0.10.0
libtpu: 0.0.40
codegen_flags: <defaults>
</compile_context>

<pallas_src>
import functools

import jax
import jax.numpy as jnp
from jax.experimental import pallas as pl
from jax.experimental.pallas import tpu as pltpu

DROPOUT_P = 0.1


def _round_up(n: int, m: int) -> int:
    return ((n + m - 1) // m) * m


def _keep_mask(shape, seed_u32, row_offset_u32, salt, threshold_u32):
    """Deterministic per-element keep mask: hash(seed, global_row, col, salt) < thr."""
    rows = jax.lax.broadcasted_iota(jnp.uint32, shape, 0) + row_offset_u32
    cols = jax.lax.broadcasted_iota(jnp.uint32, shape, 1)
    x = rows * jnp.uint32(0x01000193) + cols
    x = x ^ (seed_u32 + jnp.uint32(salt))
    # murmur/splitmix-style finalizer for avalanche
    x = (x ^ (x >> 16)) * jnp.uint32(0x7FEB352D)
    x = (x ^ (x >> 15)) * jnp.uint32(0x846CA68B)
    x = x ^ (x >> 16)
    return x < threshold_u32


def encoder_kernel(seed_ref,                                   # scalar prefetch (SMEM)
                   x_ref, w1_ref, b1_ref, w2_ref, b2_ref, w3_ref, b3_ref,
                   o_ref,
                   *, training: bool, block_b: int, keep_prob: float):
    if training:
        seed_u32 = seed_ref[0].astype(jnp.uint32)
        row0 = (pl.program_id(0) * block_b).astype(jnp.uint32)
        inv_keep = jnp.float32(1.0 / keep_prob)
        thr = jnp.uint32(int(round(keep_prob * (2.0 ** 32))))

    # ---- fc1 -> (dropout) -> relu ----
    h = jnp.dot(x_ref[...].astype(jnp.bfloat16), w1_ref[...],
                preferred_element_type=jnp.float32) + b1_ref[...]
    if training:
        keep = _keep_mask(h.shape, seed_u32, row0, 0x3C6EF372, thr)
        h = jnp.where(keep & (h > 0.0), h * inv_keep, 0.0)
    else:
        h = jnp.maximum(h, 0.0)

    # ---- fc2 -> (dropout) -> relu ----
    h = jnp.dot(h.astype(jnp.bfloat16), w2_ref[...],
                preferred_element_type=jnp.float32) + b2_ref[...]
    if training:
        keep = _keep_mask(h.shape, seed_u32, row0, 0x9E3779B9, thr)
        h = jnp.where(keep & (h > 0.0), h * inv_keep, 0.0)
    else:
        h = jnp.maximum(h, 0.0)

    # ---- fc3 ----
    o_ref[...] = (jnp.dot(h.astype(jnp.bfloat16), w3_ref[...],
                          preferred_element_type=jnp.float32) + b3_ref[...]
                  ).astype(o_ref.dtype)


def _vmem_budget_bytes(tb, din_p, dh_p, de_p):
    w_bytes = 2 * (din_p * dh_p + dh_p * dh_p + dh_p * de_p)      # bf16 weights
    b_bytes = 4 * (2 * dh_p + de_p)                                # f32 biases
    io_bytes = 4 * tb * (din_p + de_p)                             # f32 x / out tiles
    act_bytes = 4 * tb * dh_p * 2                                  # hidden activations
    need = 2 * (w_bytes + b_bytes + io_bytes) + act_bytes          # 2x: double-buffer bound
    return min(max(need + (4 << 20), 16 << 20), 100 << 20)


def encoder_forward(x, params, seed: int = 0, training: bool = True):
    """x: (B, input_dim) f32.  params: dict of w1,b1,w2,b2,w3,b3 (f32, W as (in,out))."""
    w1, b1, w2, b2, w3, b3 = (params[k] for k in ("w1", "b1", "w2", "b2", "w3", "b3"))
    B, Din = x.shape
    Dh = w1.shape[1]
    De = w3.shape[1]

    # Lane-dense padding (multiples of 128) and sublane-aligned batch tiling.
    Din_p = _round_up(Din, 128)
    Dh_p = _round_up(Dh, 128)
    De_p = _round_up(De, 128)
    TB = min(256, _round_up(B, 8))
    Bp = _round_up(B, TB)

    xp = jnp.zeros((Bp, Din_p), jnp.float32).at[:B, :Din].set(x)

    def pad_w(w, r, c):
        return jnp.zeros((r, c), jnp.bfloat16).at[:w.shape[0], :w.shape[1]].set(
            w.astype(jnp.bfloat16))

    def pad_b(b, c):
        return jnp.zeros((1, c), jnp.float32).at[:, :b.shape[-1]].set(b.reshape(1, -1))

    w1p, b1p = pad_w(w1, Din_p, Dh_p), pad_b(b1, Dh_p)
    w2p, b2p = pad_w(w2, Dh_p, Dh_p), pad_b(b2, Dh_p)
    w3p, b3p = pad_w(w3, Dh_p, De_p), pad_b(b3, De_p)

    kernel = functools.partial(encoder_kernel, training=training, block_b=TB,
                               keep_prob=1.0 - DROPOUT_P)

    out = pl.pallas_call(
        kernel,
        out_shape=jax.ShapeDtypeStruct((Bp, De_p), jnp.float32),
        grid_spec=pltpu.PrefetchScalarGridSpec(
            num_scalar_prefetch=1,
            grid=(Bp // TB,),
            in_specs=[
                pl.BlockSpec((TB, Din_p), lambda i, s: (i, 0)),    # x tile (pipelined)
                pl.BlockSpec((Din_p, Dh_p), lambda i, s: (0, 0)),  # w1 (resident)
                pl.BlockSpec((1, Dh_p), lambda i, s: (0, 0)),      # b1
                pl.BlockSpec((Dh_p, Dh_p), lambda i, s: (0, 0)),   # w2
                pl.BlockSpec((1, Dh_p), lambda i, s: (0, 0)),      # b2
                pl.BlockSpec((Dh_p, De_p), lambda i, s: (0, 0)),   # w3
                pl.BlockSpec((1, De_p), lambda i, s: (0, 0)),      # b3
            ],
            out_specs=pl.BlockSpec((TB, De_p), lambda i, s: (i, 0)),
        ),
        compiler_params=pltpu.CompilerParams(
            dimension_semantics=("parallel",),
            vmem_limit_bytes=_vmem_budget_bytes(TB, Din_p, Dh_p, De_p)),
    )(jnp.array([seed], dtype=jnp.int32), xp, w1p, b1p, w2p, b2p, w3p, b3p)

    return out[:B, :De]


def init_params(key, input_dim, hidden_dim, encoded_dim):
    """Deterministic init matching nn.Linear shapes (stored transposed, f32)."""
    ks = jax.random.split(key, 6)

    def linear(kw, kb, fan_in, fan_out):
        bound = 1.0 / jnp.sqrt(jnp.float32(fan_in))
        w = jax.random.uniform(kw, (fan_in, fan_out), jnp.float32, -bound, bound)
        b = jax.random.uniform(kb, (1, fan_out), jnp.float32, -bound, bound)
        return w, b

    w1, b1 = linear(ks[0], ks[1], input_dim, hidden_dim)
    w2, b2 = linear(ks[2], ks[3], hidden_dim, hidden_dim)
    w3, b3 = linear(ks[4], ks[5], hidden_dim, encoded_dim)
    return dict(w1=w1, b1=b1, w2=w2, b2=b2, w3=w3, b3=b3)


def ref_eval(x, p):
    """Pure-JAX eval-mode reference with the same bf16-matmul / f32-accumulate math."""
    def lin(a, w, b):
        return jnp.dot(a.astype(jnp.bfloat16), w.astype(jnp.bfloat16),
                       preferred_element_type=jnp.float32) + b
    h = jnp.maximum(lin(x, p["w1"], p["b1"]), 0.0)
    h = jnp.maximum(lin(h, p["w2"], p["b2"]), 0.0)
    return lin(h, p["w3"], p["b3"])


if __name__ == "__main__":
    # Small shapes consistent with the module: batch=8, input_dim=16,
    # hidden_dim=32, encoded_dim=8.
    B, INPUT_DIM, HIDDEN_DIM, ENCODED_DIM = 8, 16, 32, 8

    key = jax.random.PRNGKey(0)
    k_x, k_p = jax.random.split(key)
    x = jax.random.normal(k_x, (B, INPUT_DIM), dtype=jnp.float32)
    params = init_params(k_p, INPUT_DIM, HIDDEN_DIM, ENCODED_DIM)

    # Eval mode (dropout = identity): check against pure-JAX reference.
    out_eval = encoder_forward(x, params, seed=0, training=False)
    jax.block_until_ready(out_eval)
    ref = ref_eval(x, params)
    assert out_eval.shape == (B, ENCODED_DIM)
    assert jnp.allclose(out_eval, ref, atol=1e-2, rtol=1e-2), \
        float(jnp.max(jnp.abs(out_eval - ref)))

    # Train mode (deterministic in-kernel dropout): shape / finiteness check.
    # TODO(synk): dropout uses a counter-based hash RNG, not torch's RNG stream
    # (same keep-prob and 1/(1-p) scaling semantics, different random numbers).
    out_train = encoder_forward(x, params, seed=1234, training=True)
    jax.block_until_ready(out_train)
    assert out_train.shape == (B, ENCODED_DIM)
    assert bool(jnp.all(jnp.isfinite(out_train)))

    print("KERNEL_OK")
</pallas_src>

<mosaic_0001>
module attributes {stable_mosaic.version = 11 : i64} {
  func.func @encoder_kernel(%arg0: i32, %arg1: memref<1xi32, #tpu.memory_space<smem>>, %arg2: memref<8x128xf32, #tpu.memory_space<vmem>>, %arg3: memref<128x128xbf16, #tpu.memory_space<vmem>>, %arg4: memref<1x128xf32, #tpu.memory_space<vmem>>, %arg5: memref<128x128xbf16, #tpu.memory_space<vmem>>, %arg6: memref<1x128xf32, #tpu.memory_space<vmem>>, %arg7: memref<128x128xbf16, #tpu.memory_space<vmem>>, %arg8: memref<1x128xf32, #tpu.memory_space<vmem>>, %arg9: memref<8x128xf32, #tpu.memory_space<vmem>>) attributes {dimension_semantics = [#tpu.dimension_semantics<parallel>], iteration_bounds = array<i64: 1>, scalar_prefetch = 1 : i64, scratch_operands = 0 : i64, tpu.core_type = #tpu.core_type<tc>, window_params = [{transform_indices = @transform_0, window_bounds = array<i64: 8, 128>}, {pipeline_mode = #tpu.pipeline_mode<synchronous>, transform_indices = @transform_1, window_bounds = array<i64: 128, 128>}, {pipeline_mode = #tpu.pipeline_mode<synchronous>, transform_indices = @transform_2, window_bounds = array<i64: 1, 128>}, {pipeline_mode = #tpu.pipeline_mode<synchronous>, transform_indices = @transform_3, window_bounds = array<i64: 128, 128>}, {pipeline_mode = #tpu.pipeline_mode<synchronous>, transform_indices = @transform_4, window_bounds = array<i64: 1, 128>}, {pipeline_mode = #tpu.pipeline_mode<synchronous>, transform_indices = @transform_5, window_bounds = array<i64: 128, 128>}, {pipeline_mode = #tpu.pipeline_mode<synchronous>, transform_indices = @transform_6, window_bounds = array<i64: 1, 128>}, {transform_indices = @transform_7, window_bounds = array<i64: 8, 128>}]} {
    %c0 = arith.constant 0 : index
    %c0_0 = arith.constant 0 : index
    %0 = vector.load %arg2[%c0, %c0_0] : memref<8x128xf32, #tpu.memory_space<vmem>>, vector<8x128xf32>
    %1 = arith.truncf %0 : vector<8x128xf32> to vector<8x128xbf16>
    %c0_1 = arith.constant 0 : index
    %c0_2 = arith.constant 0 : index
    %2 = vector.load %arg3[%c0_1, %c0_2] : memref<128x128xbf16, #tpu.memory_space<vmem>>, vector<128x128xbf16>
    %cst = arith.constant dense<0.000000e+00> : vector<8x128xf32>
    %3 = tpu.matmul %1, %2, %cst {dimension_numbers = #tpu.dot_dimension_numbers<[1], [0], [0], [1], [0, 0, 1, 1], [], []>} : vector<8x128xbf16>, vector<128x128xbf16>, vector<8x128xf32> -> vector<8x128xf32>
    %c0_3 = arith.constant 0 : index
    %c0_4 = arith.constant 0 : index
    %4 = vector.load %arg4[%c0_3, %c0_4] : memref<1x128xf32, #tpu.memory_space<vmem>>, vector<1x128xf32>
    %5 = vector.broadcast %4 : vector<1x128xf32> to vector<8x128xf32>
    %6 = arith.addf %3, %5 : vector<8x128xf32>
    %cst_5 = arith.constant 0.000000e+00 : f32
    %7 = vector.broadcast %cst_5 : f32 to vector<8x128xf32>
    %8 = arith.maximumf %6, %7 : vector<8x128xf32>
    %9 = arith.truncf %8 : vector<8x128xf32> to vector<8x128xbf16>
    %c0_6 = arith.constant 0 : index
    %c0_7 = arith.constant 0 : index
    %10 = vector.load %arg5[%c0_6, %c0_7] : memref<128x128xbf16, #tpu.memory_space<vmem>>, vector<128x128xbf16>
    %cst_8 = arith.constant dense<0.000000e+00> : vector<8x128xf32>
    %11 = tpu.matmul %9, %10, %cst_8 {dimension_numbers = #tpu.dot_dimension_numbers<[1], [0], [0], [1], [0, 0, 1, 1], [], []>} : vector<8x128xbf16>, vector<128x128xbf16>, vector<8x128xf32> -> vector<8x128xf32>
    %c0_9 = arith.constant 0 : index
    %c0_10 = arith.constant 0 : index
    %12 = vector.load %arg6[%c0_9, %c0_10] : memref<1x128xf32, #tpu.memory_space<vmem>>, vector<1x128xf32>
    %13 = vector.broadcast %12 : vector<1x128xf32> to vector<8x128xf32>
    %14 = arith.addf %11, %13 : vector<8x128xf32>
    %cst_11 = arith.constant 0.000000e+00 : f32
    %15 = vector.broadcast %cst_11 : f32 to vector<8x128xf32>
    %16 = arith.maximumf %14, %15 : vector<8x128xf32>
    %17 = arith.truncf %16 : vector<8x128xf32> to vector<8x128xbf16>
    %c0_12 = arith.constant 0 : index
    %c0_13 = arith.constant 0 : index
    %18 = vector.load %arg7[%c0_12, %c0_13] : memref<128x128xbf16, #tpu.memory_space<vmem>>, vector<128x128xbf16>
    %cst_14 = arith.constant dense<0.000000e+00> : vector<8x128xf32>
    %19 = tpu.matmul %17, %18, %cst_14 {dimension_numbers = #tpu.dot_dimension_numbers<[1], [0], [0], [1], [0, 0, 1, 1], [], []>} : vector<8x128xbf16>, vector<128x128xbf16>, vector<8x128xf32> -> vector<8x128xf32>
    %c0_15 = arith.constant 0 : index
    %c0_16 = arith.constant 0 : index
    %20 = vector.load %arg8[%c0_15, %c0_16] : memref<1x128xf32, #tpu.memory_space<vmem>>, vector<1x128xf32>
    %21 = vector.broadcast %20 : vector<1x128xf32> to vector<8x128xf32>
    %22 = arith.addf %19, %21 : vector<8x128xf32>
    %c0_17 = arith.constant 0 : index
    %c0_18 = arith.constant 0 : index
    %23 = vector.load %arg9[%c0_17, %c0_18] : memref<8x128xf32, #tpu.memory_space<vmem>>, vector<8x128xf32>
    tpu.vector_store %arg9[%c0_17, %c0_18], %22 {strides = array<i32>} : memref<8x128xf32, #tpu.memory_space<vmem>>, vector<8x128xf32>,
    return
  }
  func.func @transform_0(%arg0: i32, %arg1: memref<1xi32, #tpu.memory_space<smem>>) -> (i32, i32) {
    %c0_i32 = arith.constant 0 : i32
    %c0_i32_0 = arith.constant 0 : i32
    return %arg0, %c0_i32 : i32, i32
  }
  func.func @transform_1(%arg0: i32, %arg1: memref<1xi32, #tpu.memory_space<smem>>) -> (i32, i32) {
    %c0_i32 = arith.constant 0 : i32
    %c0_i32_0 = arith.constant 0 : i32
    %c0_i32_1 = arith.constant 0 : i32
    return %c0_i32, %c0_i32_0 : i32, i32
  }
  func.func @transform_2(%arg0: i32, %arg1: memref<1xi32, #tpu.memory_space<smem>>) -> (i32, i32) {
    %c0_i32 = arith.constant 0 : i32
    %c0_i32_0 = arith.constant 0 : i32
    %c0_i32_1 = arith.constant 0 : i32
    return %c0_i32, %c0_i32_0 : i32, i32
  }
  func.func @transform_3(%arg0: i32, %arg1: memref<1xi32, #tpu.memory_space<smem>>) -> (i32, i32) {
    %c0_i32 = arith.constant 0 : i32
    %c0_i32_0 = arith.constant 0 : i32
    %c0_i32_1 = arith.constant 0 : i32
    return %c0_i32, %c0_i32_0 : i32, i32
  }
  func.func @transform_4(%arg0: i32, %arg1: memref<1xi32, #tpu.memory_space<smem>>) -> (i32, i32) {
    %c0_i32 = arith.constant 0 : i32
    %c0_i32_0 = arith.constant 0 : i32
    %c0_i32_1 = arith.constant 0 : i32
    return %c0_i32, %c0_i32_0 : i32, i32
  }
  func.func @transform_5(%arg0: i32, %arg1: memref<1xi32, #tpu.memory_space<smem>>) -> (i32, i32) {
    %c0_i32 = arith.constant 0 : i32
    %c0_i32_0 = arith.constant 0 : i32
    %c0_i32_1 = arith.constant 0 : i32
    return %c0_i32, %c0_i32_0 : i32, i32
  }
  func.func @transform_6(%arg0: i32, %arg1: memref<1xi32, #tpu.memory_space<smem>>) -> (i32, i32) {
    %c0_i32 = arith.constant 0 : i32
    %c0_i32_0 = arith.constant 0 : i32
    %c0_i32_1 = arith.constant 0 : i32
    return %c0_i32, %c0_i32_0 : i32, i32
  }
  func.func @transform_7(%arg0: i32, %arg1: memref<1xi32, #tpu.memory_space<smem>>) -> (i32, i32) {
    %c0_i32 = arith.constant 0 : i32
    %c0_i32_0 = arith.constant 0 : i32
    return %arg0, %c0_i32 : i32, i32
  }
}

</mosaic_0001>

<llo_original>
// kernel: tpu_custom_call.1
$region0: #{tpu_custom_call.1}
  #allocation0 [shape = 'u32[]', space=smem, size = 0x4, offset = 0x4, fixed_abs, tag = 'smem constant byte address 0x4 - core index']
  #allocation1 [shape = 'u32[144,128]{1,0:T(1,128)}', space=vmem, size = 0x12000, scoped, tag = 'internal scratch']
  #allocation2 [shape = 's32[1]{0}', space=sflag, size = 0x4, scoped, tag = 'scoped memory for tpu_custom_call.1']
  #allocation3 [shape = 's32[1]{0:T(128)S(6)}', space=smem, size = 0x200, scoped, tag = 'prefetched SMEM operand 0']
  %s0 = inlined_call_operand.<no memory space> [shape: s32[1], index: 0, kind: input, shape index: {}]
  %s1 = inlined_call_operand.hbm [shape: f32[8,128], index: 1, kind: input, shape index: {}]
  %s2 = inlined_call_operand.hbm [shape: bf16[128,128], index: 2, kind: input, shape index: {}]
  %s3 = inlined_call_operand.vmem [shape: f32[1,128], index: 3, kind: input, shape index: {}]
  %s4 = inlined_call_operand.hbm [shape: bf16[128,128], index: 4, kind: input, shape index: {}]
  %s5 = inlined_call_operand.vmem [shape: f32[1,128], index: 5, kind: input, shape index: {}]
  %s6 = inlined_call_operand.hbm [shape: bf16[128,128], index: 6, kind: input, shape index: {}]
  %s7 = inlined_call_operand.vmem [shape: f32[1,128], index: 7, kind: input, shape index: {}]
  %s8 = inlined_call_operand.hbm [shape: f32[8,128], index: 8, kind: output, shape index: {}]
  %s9 = sld [smem:[#allocation0]]
  $region54: #{tpu_custom_call.1} parent=0
    _
  %s11 = ssub.s32 1, %s9
  %s12 = scalar_select 0, %s11, %s9
  %13 = sst [smem:[#allocation3]] %s0
  $region1: #{tpu_custom_call.1} parent=0
    #allocation4 [shape = 'u8[4096]{0}', space=vmem, size = 0x1000, scoped, tag = 'input window, operand 1, single buffered']
    #allocation5 [shape = 's32[1]{0}', space=sflag, size = 0x4, scoped, tag = 'scoped memory for tpu_custom_call.1']
    #allocation6 [shape = 's32[1]{0}', space=sflag, size = 0x4, scoped, tag = 'scoped memory for tpu_custom_call.1']
    #allocation7 [shape = 'u8[32768]{0}', space=vmem, size = 0x8000, scoped, tag = 'input window, operand 2, single buffered']
    #allocation8 [shape = 's32[1]{0}', space=sflag, size = 0x4, scoped, tag = 'scoped memory for tpu_custom_call.1']
    #allocation9 [shape = 'u8[32768]{0}', space=vmem, size = 0x8000, scoped, tag = 'input window, operand 4, single buffered']
    #allocation10 [shape = 'u8[32768]{0}', space=vmem, size = 0x8000, scoped, tag = 'input window, operand 6, single buffered']
    #allocation11 [shape = 's32[1]{0}', space=sflag, size = 0x4, scoped, tag = 'scoped memory for tpu_custom_call.1']
    #allocation12 [shape = 'u8[4096]{0}', space=vmem, size = 0x1000, scoped, tag = 'output window, operand 0, single buffered']
    %14 = vsyncpa [#allocation5], 0
    %15 = vsyncpa [#allocation8], 0
    %16 = vsyncpa [#allocation11], 0
    %17 = vsyncpa [#allocation6], 0
    // Predicated region
    $region2: #{tpu_custom_call.1} parent=1 // pred_check
      _
    $region3: #{tpu_custom_call.1} parent=1 // pred_check_branch
      %19 = sbr.rel (0) target = $region5
    $region4: #{tpu_custom_call.1} parent=1 // pred_region
      %s21 = ssub.s32 128, 128
      %22 = vsyncadd [#allocation5], %s21
      %s24 = sshll.u32 [#allocation4], 4
      %s25 = int_to_ptr.vmem [resolvable:$true] %s24
      %27 = dma.hbm_to_vmem [thread:$0]  %s1, 128, %s25, [#allocation5]
    $region5: #{tpu_custom_call.1} parent=1 // pred_fallthru
      _
    // Predicated region
    $region6: #{tpu_custom_call.1} parent=1 // pred_check
      _
    $region7: #{tpu_custom_call.1} parent=1 // pred_check_branch
      %29 = sbr.rel (0) target = $region9
    $region8: #{tpu_custom_call.1} parent=1 // pred_region
      %s31 = ssub.s32 1024, 1024
      %32 = vsyncadd [#allocation8], %s31
      %s33 = sshll.u32 [#allocation7], 4
      %s34 = int_to_ptr.vmem [resolvable:$true] %s33
      %39 = dma.hbm_to_vmem [thread:$0]  %s2, 1024, %s34, [#allocation8], 64, 64, 4
    $region9: #{tpu_custom_call.1} parent=1 // pred_fallthru
      _
    // Predicated region
    $region10: #{tpu_custom_call.1} parent=1 // pred_check
      _
    $region11: #{tpu_custom_call.1} parent=1 // pred_check_branch
      %41 = sbr.rel (0) target = $region13
    $region12: #{tpu_custom_call.1} parent=1 // pred_region
      _
    $region13: #{tpu_custom_call.1} parent=1 // pred_fallthru
      _
    // Predicated region
    $region14: #{tpu_custom_call.1} parent=1 // pred_check
      _
    $region15: #{tpu_custom_call.1} parent=1 // pred_check_branch
      %43 = sbr.rel (0) target = $region17
    $region16: #{tpu_custom_call.1} parent=1 // pred_region
      %s45 = ssub.s32 1024, 1024
      %46 = vsyncadd [#allocation8], %s45
      %s47 = sshll.u32 [#allocation9], 4
      %s48 = int_to_ptr.vmem [resolvable:$true] %s47
      %53 = dma.hbm_to_vmem [thread:$0]  %s4, 1024, %s48, [#allocation8], 64, 64, 4
    $region17: #{tpu_custom_call.1} parent=1 // pred_fallthru
      _
    // Predicated region
    $region18: #{tpu_custom_call.1} parent=1 // pred_check
      _
    $region19: #{tpu_custom_call.1} parent=1 // pred_check_branch
      %55 = sbr.rel (0) target = $region21
    $region20: #{tpu_custom_call.1} parent=1 // pred_region
      _
    $region21: #{tpu_custom_call.1} parent=1 // pred_fallthru
      _
    // Predicated region
    $region22: #{tpu_custom_call.1} parent=1 // pred_check
      _
    $region23: #{tpu_custom_call.1} parent=1 // pred_check_branch
      %57 = sbr.rel (0) target = $region25
    $region24: #{tpu_custom_call.1} parent=1 // pred_region
      %s59 = ssub.s32 1024, 1024
      %60 = vsyncadd [#allocation11], %s59
      %s61 = sshll.u32 [#allocation10], 4
      %s62 = int_to_ptr.vmem [resolvable:$true] %s61
      %67 = dma.hbm_to_vmem [thread:$0]  %s6, 1024, %s62, [#allocation11], 64, 64, 4
    $region25: #{tpu_custom_call.1} parent=1 // pred_fallthru
      _
    // Predicated region
    $region26: #{tpu_custom_call.1} parent=1 // pred_check
      _
    $region27: #{tpu_custom_call.1} parent=1 // pred_check_branch
      %69 = sbr.rel (0) target = $region29
    $region28: #{tpu_custom_call.1} parent=1 // pred_region
      _
    $region29: #{tpu_custom_call.1} parent=1 // pred_fallthru
      _
    // Predicated region
    $region30: #{tpu_custom_call.1} parent=1 // pred_check
      _
    $region31: #{tpu_custom_call.1} parent=1 // pred_check_branch
      %71 = sbr.rel (0) target = $region33
    $region32: #{tpu_custom_call.1} parent=1 // pred_region
      %72 = dma.done [#allocation5], 128
    $region33: #{tpu_custom_call.1} parent=1 // pred_fallthru
      _
    // Predicated region
    $region34: #{tpu_custom_call.1} parent=1 // pred_check
      _
    $region35: #{tpu_custom_call.1} parent=1 // pred_check_branch
      %74 = sbr.rel (0) target = $region37
    $region36: #{tpu_custom_call.1} parent=1 // pred_region
      %75 = dma.done [#allocation8], 1024
    $region37: #{tpu_custom_call.1} parent=1 // pred_fallthru
      _
    // Predicated region
    $region38: #{tpu_custom_call.1} parent=1 // pred_check
      _
    $region39: #{tpu_custom_call.1} parent=1 // pred_check_branch
      %77 = sbr.rel (0) target = $region41
    $region40: #{tpu_custom_call.1} parent=1 // pred_region
      %78 = dma.done [#allocation8], 1024
    $region41: #{tpu_custom_call.1} parent=1 // pred_fallthru
      _
    // Predicated region
    $region42: #{tpu_custom_call.1} parent=1 // pred_check
      _
    $region43: #{tpu_custom_call.1} parent=1 // pred_check_branch
      %80 = sbr.rel (0) target = $region45
    $region44: #{tpu_custom_call.1} parent=1 // pred_region
      %81 = dma.done [#allocation11], 1024
    $region45: #{tpu_custom_call.1} parent=1 // pred_fallthru
      _
    %v83 = vld [vmem:[#allocation4] sm:$0xff]
    %v84 = vpack.c.bf16 %v83, %v83
    %v85 = vld [vmem:[#allocation7] sm:$0xf]
    %v86 = vld [vmem:[#allocation7 + $0x4] sm:$0xf]
    %v87 = vld [vmem:[#allocation7 + $0x8] sm:$0xf]
    %v88 = vld [vmem:[#allocation7 + $0xc] sm:$0xf]
    %v89 = vld [vmem:[#allocation7 + $0x10] sm:$0xf]
    %v90 = vld [vmem:[#allocation7 + $0x14] sm:$0xf]
    %v91 = vld [vmem:[#allocation7 + $0x18] sm:$0xf]
    %v92 = vld [vmem:[#allocation7 + $0x1c] sm:$0xf]
    %v93 = vld [vmem:[#allocation7 + $0x20] sm:$0xf]
    %v94 = vld [vmem:[#allocation7 + $0x24] sm:$0xf]
    %v95 = vld [vmem:[#allocation7 + $0x28] sm:$0xf]
    %v96 = vld [vmem:[#allocation7 + $0x2c] sm:$0xf]
    %v97 = vld [vmem:[#allocation7 + $0x30] sm:$0xf]
    %v98 = vld [vmem:[#allocation7 + $0x34] sm:$0xf]
    %v99 = vld [vmem:[#allocation7 + $0x38] sm:$0xf]
    %v100 = vld [vmem:[#allocation7 + $0x3c] sm:$0xf]
    %v101 = vld [vmem:[%s3] sm:$0x1]
    %v103 = vlaneseq
    %v104 = vshrl.u32 %v103, 7
    %v105 = vsub.s32 0, %v104
    %v106 = vrot.slane %v101, %v105
    %v124 = vunpack.c.l.b16 %v85
    %v125 = vunpack.c.l.b16 %v86
    %v126 = vunpack.c.l.b16 %v87
    %v127 = vunpack.c.l.b16 %v88
    %v128 = vunpack.c.l.b16 %v89
    %v129 = vunpack.c.l.b16 %v90
    %v130 = vunpack.c.l.b16 %v91
    %v131 = vunpack.c.l.b16 %v92
    %v132 = vunpack.c.l.b16 %v93
    %v133 = vunpack.c.l.b16 %v94
    %v134 = vunpack.c.l.b16 %v95
    %v135 = vunpack.c.l.b16 %v96
    %v136 = vunpack.c.l.b16 %v97
    %v137 = vunpack.c.l.b16 %v98
    %v138 = vunpack.c.l.b16 %v99
    %v139 = vunpack.c.l.b16 %v100
    %v140 = vpack.c.b16 %v125, %v124
    %v141 = vpack.c.b16 %v127, %v126
    %v142 = vpack.c.b16 %v129, %v128
    %v143 = vpack.c.b16 %v131, %v130
    %v144 = vpack.c.b16 %v133, %v132
    %v145 = vpack.c.b16 %v135, %v134
    %v146 = vpack.c.b16 %v137, %v136
    %v147 = vpack.c.b16 %v139, %v138
    %156 = vmatprep.subr.bf16.mxu0 0
    %157 = vmatpush1.bf16.msra.mxu0 %v140
    %158 = vmatprep.subr.bf16.mxu0 0
    %159 = vmatpush1.bf16.msra.mxu0 %v141
    %160 = vmatprep.subr.bf16.mxu0 0
    %161 = vmatpush1.bf16.msra.mxu0 %v142
    %162 = vmatprep.subr.bf16.mxu0 0
    %163 = vmatpush1.bf16.msra.mxu0 %v143
    %164 = vmatprep.subr.bf16.mxu0 0
    %165 = vmatpush1.bf16.msra.mxu0 %v144
    %166 = vmatprep.subr.bf16.mxu0 0
    %167 = vmatpush1.bf16.msra.mxu0 %v145
    %168 = vmatprep.subr.bf16.mxu0 0
    %169 = vmatpush1.bf16.msra.mxu0 %v146
    %170 = vmatprep.subr.bf16.mxu0 0
    %171 = vmatpush1.bf16.msra.mxu0 %v147
    %172 = vmatprep.subr.bf16.mxu0 0
    %173 = vmatpush1.bf16.msra.mxu0 0
    %174 = vmatprep.subr.bf16.mxu0 0
    %175 = vmatpush1.bf16.msra.mxu0 0
    %176 = vmatprep.subr.bf16.mxu0 0
    %177 = vmatpush1.bf16.msra.mxu0 0
    %178 = vmatprep.subr.bf16.mxu0 0
    %179 = vmatpush1.bf16.msra.mxu0 0
    %180 = vmatprep.subr.bf16.mxu0 0
    %181 = vmatpush1.bf16.msra.mxu0 0
    %182 = vmatprep.subr.bf16.mxu0 0
    %183 = vmatpush1.bf16.msra.mxu0 0
    %184 = vmatprep.subr.bf16.mxu0 0
    %185 = vmatpush1.bf16.msra.mxu0 0
    %186 = vmatprep.subr.bf16.mxu0 0
    %187 = vmatpush1.bf16.msra.mxu0 0
    %188 = vmatprep.mubr.bf16.mxu0 0
    %189 = vmatmul.mubr.bf16.gmra.mrb[0].mxu0 %v84
    %v190 = vpop.f32.mrb[0].mxu0
    %v191 = vadd.f32 %v106, %v190
    %v192 = vpop.f32.mrb[0].mxu0
    %v193 = vpop.f32.mrb[0].mxu0
    %v194 = vpop.f32.mrb[0].mxu0
    %195 = vdwg.mxu0
    %v196 = vmax.f32 %v191, 0.0
    %v197 = vpack.c.bf16 %v196, %v196
    %v198 = vld [vmem:[#allocation9] sm:$0xf]
    %v199 = vld [vmem:[#allocation9 + $0x4] sm:$0xf]
    %v200 = vld [vmem:[#allocation9 + $0x8] sm:$0xf]
    %v201 = vld [vmem:[#allocation9 + $0xc] sm:$0xf]
    %v202 = vld [vmem:[#allocation9 + $0x10] sm:$0xf]
    %v203 = vld [vmem:[#allocation9 + $0x14] sm:$0xf]
    %v204 = vld [vmem:[#allocation9 + $0x18] sm:$0xf]
    %v205 = vld [vmem:[#allocation9 + $0x1c] sm:$0xf]
    %v206 = vld [vmem:[#allocation9 + $0x20] sm:$0xf]
    %v207 = vld [vmem:[#allocation9 + $0x24] sm:$0xf]
    %v208 = vld [vmem:[#allocation9 + $0x28] sm:$0xf]
    %v209 = vld [vmem:[#allocation9 + $0x2c] sm:$0xf]
    %v210 = vld [vmem:[#allocation9 + $0x30] sm:$0xf]
    %v211 = vld [vmem:[#allocation9 + $0x34] sm:$0xf]
    %v212 = vld [vmem:[#allocation9 + $0x38] sm:$0xf]
    %v213 = vld [vmem:[#allocation9 + $0x3c] sm:$0xf]
    %v214 = vld [vmem:[%s5] sm:$0x1]
    %v216 = vlaneseq
    %v217 = vshrl.u32 %v216, 7
    %v218 = vsub.s32 0, %v217
    %v219 = vrot.slane %v214, %v218
    %v237 = vunpack.c.l.b16 %v198
    %v238 = vunpack.c.l.b16 %v199
    %v239 = vunpack.c.l.b16 %v200
    %v240 = vunpack.c.l.b16 %v201
    %v241 = vunpack.c.l.b16 %v202
    %v242 = vunpack.c.l.b16 %v203
    %v243 = vunpack.c.l.b16 %v204
    %v244 = vunpack.c.l.b16 %v205
    %v245 = vunpack.c.l.b16 %v206
    %v246 = vunpack.c.l.b16 %v207
    %v247 = vunpack.c.l.b16 %v208
    %v248 = vunpack.c.l.b16 %v209
    %v249 = vunpack.c.l.b16 %v210
    %v250 = vunpack.c.l.b16 %v211
    %v251 = vunpack.c.l.b16 %v212
    %v252 = vunpack.c.l.b16 %v213
    %v253 = vpack.c.b16 %v238, %v237
    %v254 = vpack.c.b16 %v240, %v239
    %v255 = vpack.c.b16 %v242, %v241
    %v256 = vpack.c.b16 %v244, %v243
    %v257 = vpack.c.b16 %v246, %v245
    %v258 = vpack.c.b16 %v248, %v247
    %v259 = vpack.c.b16 %v250, %v249
    %v260 = vpack.c.b16 %v252, %v251
    %269 = vmatprep.subr.bf16.mxu0 0
    %270 = vmatpush1.bf16.msra.mxu0 %v253
    %271 = vmatprep.subr.bf16.mxu0 0
    %272 = vmatpush1.bf16.msra.mxu0 %v254
    %273 = vmatprep.subr.bf16.mxu0 0
    %274 = vmatpush1.bf16.msra.mxu0 %v255
    %275 = vmatprep.subr.bf16.mxu0 0
    %276 = vmatpush1.bf16.msra.mxu0 %v256
    %277 = vmatprep.subr.bf16.mxu0 0
    %278 = vmatpush1.bf16.msra.mxu0 %v257
    %279 = vmatprep.subr.bf16.mxu0 0
    %280 = vmatpush1.bf16.msra.mxu0 %v258
    %281 = vmatprep.subr.bf16.mxu0 0
    %282 = vmatpush1.bf16.msra.mxu0 %v259
    %283 = vmatprep.subr.bf16.mxu0 0
    %284 = vmatpush1.bf16.msra.mxu0 %v260
    %285 = vmatprep.subr.bf16.mxu0 0
    %286 = vmatpush1.bf16.msra.mxu0 0
    %287 = vmatprep.subr.bf16.mxu0 0
    %288 = vmatpush1.bf16.msra.mxu0 0
    %289 = vmatprep.subr.bf16.mxu0 0
    %290 = vmatpush1.bf16.msra.mxu0 0
    %291 = vmatprep.subr.bf16.mxu0 0
    %292 = vmatpush1.bf16.msra.mxu0 0
    %293 = vmatprep.subr.bf16.mxu0 0
    %294 = vmatpush1.bf16.msra.mxu0 0
    %295 = vmatprep.subr.bf16.mxu0 0
    %296 = vmatpush1.bf16.msra.mxu0 0
    %297 = vmatprep.subr.bf16.mxu0 0
    %298 = vmatpush1.bf16.msra.mxu0 0
    %299 = vmatprep.subr.bf16.mxu0 0
    %300 = vmatpush1.bf16.msra.mxu0 0
    %301 = vmatprep.mubr.bf16.mxu0 0
    %302 = vmatmul.mubr.bf16.gmra.mrb[0].mxu0 %v197
    %v303 = vpop.f32.mrb[0].mxu0
    %v304 = vadd.f32 %v219, %v303
    %v305 = vpop.f32.mrb[0].mxu0
    %v306 = vpop.f32.mrb[0].mxu0
    %v307 = vpop.f32.mrb[0].mxu0
    %308 = vdwg.mxu0
    %v309 = vmax.f32 %v304, 0.0
    %v310 = vpack.c.bf16 %v309, %v309
    %v311 = vld [vmem:[#allocation10] sm:$0xf]
    %v312 = vld [vmem:[#allocation10 + $0x4] sm:$0xf]
    %v313 = vld [vmem:[#allocation10 + $0x8] sm:$0xf]
    %v314 = vld [vmem:[#allocation10 + $0xc] sm:$0xf]
    %v315 = vld [vmem:[#allocation10 + $0x10] sm:$0xf]
    %v316 = vld [vmem:[#allocation10 + $0x14] sm:$0xf]
    %v317 = vld [vmem:[#allocation10 + $0x18] sm:$0xf]
    %v318 = vld [vmem:[#allocation10 + $0x1c] sm:$0xf]
    %v319 = vld [vmem:[#allocation10 + $0x20] sm:$0xf]
    %v320 = vld [vmem:[#allocation10 + $0x24] sm:$0xf]
    %v321 = vld [vmem:[#allocation10 + $0x28] sm:$0xf]
    %v322 = vld [vmem:[#allocation10 + $0x2c] sm:$0xf]
    %v323 = vld [vmem:[#allocation10 + $0x30] sm:$0xf]
    %v324 = vld [vmem:[#allocation10 + $0x34] sm:$0xf]
    %v325 = vld [vmem:[#allocation10 + $0x38] sm:$0xf]
    %v326 = vld [vmem:[#allocation10 + $0x3c] sm:$0xf]
    %v327 = vld [vmem:[%s7] sm:$0x1]
    %v329 = vlaneseq
    %v330 = vshrl.u32 %v329, 7
    %v331 = vsub.s32 0, %v330
    %v332 = vrot.slane %v327, %v331
    %v350 = vunpack.c.l.b16 %v311
    %v351 = vunpack.c.l.b16 %v312
    %v352 = vunpack.c.l.b16 %v313
    %v353 = vunpack.c.l.b16 %v314
    %v354 = vunpack.c.l.b16 %v315
    %v355 = vunpack.c.l.b16 %v316
    %v356 = vunpack.c.l.b16 %v317
    %v357 = vunpack.c.l.b16 %v318
    %v358 = vunpack.c.l.b16 %v319
    %v359 = vunpack.c.l.b16 %v320
    %v360 = vunpack.c.l.b16 %v321
    %v361 = vunpack.c.l.b16 %v322
    %v362 = vunpack.c.l.b16 %v323
    %v363 = vunpack.c.l.b16 %v324
    %v364 = vunpack.c.l.b16 %v325
    %v365 = vunpack.c.l.b16 %v326
    %v366 = vpack.c.b16 %v351, %v350
    %v367 = vpack.c.b16 %v353, %v352
    %v368 = vpack.c.b16 %v355, %v354
    %v369 = vpack.c.b16 %v357, %v356
    %v370 = vpack.c.b16 %v359, %v358
    %v371 = vpack.c.b16 %v361, %v360
    %v372 = vpack.c.b16 %v363, %v362
    %v373 = vpack.c.b16 %v365, %v364
    %382 = vmatprep.subr.bf16.mxu0 0
    %383 = vmatpush1.bf16.msra.mxu0 %v366
    %384 = vmatprep.subr.bf16.mxu0 0
    %385 = vmatpush1.bf16.msra.mxu0 %v367
    %386 = vmatprep.subr.bf16.mxu0 0
    %387 = vmatpush1.bf16.msra.mxu0 %v368
    %388 = vmatprep.subr.bf16.mxu0 0
    %389 = vmatpush1.bf16.msra.mxu0 %v369
    %390 = vmatprep.subr.bf16.mxu0 0
    %391 = vmatpush1.bf16.msra.mxu0 %v370
    %392 = vmatprep.subr.bf16.mxu0 0
    %393 = vmatpush1.bf16.msra.mxu0 %v371
    %394 = vmatprep.subr.bf16.mxu0 0
    %395 = vmatpush1.bf16.msra.mxu0 %v372
    %396 = vmatprep.subr.bf16.mxu0 0
    %397 = vmatpush1.bf16.msra.mxu0 %v373
    %398 = vmatprep.subr.bf16.mxu0 0
    %399 = vmatpush1.bf16.msra.mxu0 0
    %400 = vmatprep.subr.bf16.mxu0 0
    %401 = vmatpush1.bf16.msra.mxu0 0
    %402 = vmatprep.subr.bf16.mxu0 0
    %403 = vmatpush1.bf16.msra.mxu0 0
    %404 = vmatprep.subr.bf16.mxu0 0
    %405 = vmatpush1.bf16.msra.mxu0 0
    %406 = vmatprep.subr.bf16.mxu0 0
    %407 = vmatpush1.bf16.msra.mxu0 0
    %408 = vmatprep.subr.bf16.mxu0 0
    %409 = vmatpush1.bf16.msra.mxu0 0
    %410 = vmatprep.subr.bf16.mxu0 0
    %411 = vmatpush1.bf16.msra.mxu0 0
    %412 = vmatprep.subr.bf16.mxu0 0
    %413 = vmatpush1.bf16.msra.mxu0 0
    %414 = vmatprep.mubr.bf16.mxu0 0
    %415 = vmatmul.mubr.bf16.gmra.mrb[0].mxu0 %v310
    %v416 = vpop.f32.mrb[0].mxu0
    %v417 = vadd.f32 %v332, %v416
    %v418 = vpop.f32.mrb[0].mxu0
    %v419 = vpop.f32.mrb[0].mxu0
    %v420 = vpop.f32.mrb[0].mxu0
    %421 = vdwg.mxu0
    %422 = vst [vmem:[#allocation12] sm:$0xff] %v417
    // Predicated region
    $region46: #{tpu_custom_call.1} parent=1 // pred_check
      _
    $region47: #{tpu_custom_call.1} parent=1 // pred_check_branch
      %424 = sbr.rel (0) target = $region49
    $region48: #{tpu_custom_call.1} parent=1 // pred_region
      %s426 = ssub.s32 128, 128
      %427 = vsyncadd [#allocation6], %s426
      %s429 = sshll.u32 [#allocation12], 4
      %s430 = int_to_ptr.vmem [resolvable:$true] %s429
      %432 = dma.vmem_to_hbm [thread:$0]  %s430, 128, %s8, [#allocation6]
    $region49: #{tpu_custom_call.1} parent=1 // pred_fallthru
      _
    // Predicated region
    $region50: #{tpu_custom_call.1} parent=1 // pred_check
      _
    $region51: #{tpu_custom_call.1} parent=1 // pred_check_branch
      %434 = sbr.rel (0) target = $region53
    $region52: #{tpu_custom_call.1} parent=1 // pred_region
      %435 = dma.done [#allocation6], 128
    $region53: #{tpu_custom_call.1} parent=1 // pred_fallthru
      _
    %436 = vsyncpa [#allocation5], 1
    %437 = vsyncpa [#allocation8], 1
    %438 = vsyncpa [#allocation11], 1
    %439 = vsyncpa [#allocation6], 1

</llo_original>
